<compile_context>
chip_gen: v7x
topology: tpu7x:2x2x1
jax: 0.10.0
libtpu: 0.0.40
codegen_flags: <defaults>
</compile_context>

<pallas_src>
import functools
import math

import jax
import jax.numpy as jnp
from jax import lax
from jax.experimental import pallas as pl
from jax.experimental.pallas import tpu as pltpu


# ----------------------------------------------------------------------------
# Small helpers (tiling / VMEM budgeting)
# ----------------------------------------------------------------------------
def _round_up(n, m):
    return ((n + m - 1) // m) * m


def _vmem_capacity():
    try:
        return int(pltpu.get_tpu_info().vmem_capacity_bytes)
    except Exception:
        return 64 * 1024 * 1024  # conservative (v7x per-TensorCore)


def _max_seq_tile():
    """Generation-aware query/key tile: 128 fills the v5e MXU; 256 on v6e/v7x."""
    try:
        kind = jax.devices()[0].device_kind.lower()
    except Exception:
        kind = ""
    return 128 if "v5" in kind else 256


def _pick_seq_tile(seq):
    max_tile = _max_seq_tile()
    if seq >= max_tile:
        return max_tile
    return max(8, _round_up(seq, 8))


def _pick_out_tile(dout, max_tile=512):
    """Output-dim tile for the linear stages: full, or a 128-multiple divisor."""
    if dout <= max_tile:
        return dout
    for t in (512, 384, 256, 128):
        if dout % t == 0:
            return t
    return dout


def _pick_head_group(num_heads, head_dim):
    """Head-group size for the flash path: keep ~256 rows of MXU work per step."""
    cap = max(1, 256 // max(head_dim, 1))
    for hg in range(min(num_heads, cap), 0, -1):
        if num_heads % hg == 0:
            return hg
    return 1


def _block_bytes(shape, dtype):
    n = 1
    for s in shape:
        n *= s
    return n * jnp.dtype(dtype).itemsize


def _vmem_limit(block_bytes_list, extra_bytes=0):
    """Double-buffered block budget + headroom, clamped below chip capacity."""
    cap = _vmem_capacity()
    need = 2 * sum(block_bytes_list) + extra_bytes
    need = int(need * 1.25) + (4 << 20)
    hi = max(32 << 20, min(cap - (8 << 20), 96 << 20))
    return int(min(max(need, 32 << 20), hi))


def fold_qk_scale(w_qkv, b_qkv, num_heads):
    """One-time host-side fold of 1/sqrt(head_dim) into the Q projection."""
    d = w_qkv.shape[0]
    head_dim = d // num_heads
    scale = 1.0 / math.sqrt(head_dim)
    w = w_qkv.at[:, :d].multiply(scale)
    b = b_qkv.at[:d].multiply(scale)
    return w, b


# ----------------------------------------------------------------------------
# Kernels
# ----------------------------------------------------------------------------
def _linear_kernel(x_ref, w_ref, b_ref, o_ref):
    """One (batch, out-tile, row-tile) step of y = x @ W + b."""
    y = jnp.dot(x_ref[0], w_ref[...], preferred_element_type=jnp.float32)
    o_ref[0] = (y + b_ref[...]).astype(o_ref.dtype)


def _attn_probs_kernel(q_ref, k_ref, v_ref, ctx_ref, attn_ref, *, mxu_bf16):
    """One (batch, head, query-tile) step; emits probabilities (module path).

    q_ref:    (1, 1, TQ, hd)   query tile (Q already scaled by 1/sqrt(hd))
    k_ref:    (1, 1, S,  hd)   full keys for this (batch, head)
    v_ref:    (1, 1, S,  hd)   full values for this (batch, head)
    ctx_ref:  (1, 1, TQ, hd)   attention output (pre combine_heads)
    attn_ref: (1, 1, TQ, S)    attention probabilities
    """
    tq, hd = q_ref.shape[2], q_ref.shape[3]
    seq = k_ref.shape[2]

    q = q_ref[0, 0]
    k = k_ref[0, 0]
    v = v_ref[0, 0]
    if mxu_bf16 and q.dtype == jnp.float32:
        q, k, v = q.astype(jnp.bfloat16), k.astype(jnp.bfloat16), v.astype(jnp.bfloat16)

    # (TQ, S) scores on the MXU, f32 accumulation; contraction on head_dim.
    s = lax.dot_general(q, k, (((1,), (1,)), ((), ())),
                        preferred_element_type=jnp.float32)

    q0 = pl.program_id(2) * tq
    row = q0 + lax.broadcasted_iota(jnp.int32, (tq, seq), 0)
    col = lax.broadcasted_iota(jnp.int32, (tq, seq), 1)
    s = jnp.where(col > row, jnp.float32(-1e30), s)

    m = jnp.max(s, axis=-1, keepdims=True)
    e = jnp.exp(s - m)
    denom = jnp.sum(e, axis=-1, keepdims=True)
    p = e * pl.reciprocal(denom, approx=True)

    attn_ref[0, 0] = p.astype(attn_ref.dtype)
    ctx = jnp.dot(p.astype(v.dtype), v, preferred_element_type=jnp.float32)
    ctx_ref[0, 0] = ctx.astype(ctx_ref.dtype)


def _attn_flash_kernel(q_ref, k_ref, v_ref, o_ref, m_sc, l_sc, acc_sc, *,
                       mxu_bf16):
    """Flash (no-probs) path: online softmax over KV tiles, causal skip.

    q_ref:  (1, Hg, TQ, hd)   k_ref/v_ref: (1, Hg, TK, hd)
    o_ref:  (1, Hg, TQ, hd)
    m_sc/l_sc: (Hg, TQ, 1) f32   acc_sc: (Hg, TQ, hd) f32
    """
    tq, hd = q_ref.shape[2], q_ref.shape[3]
    tk = k_ref.shape[2]
    qi = pl.program_id(2)
    ki = pl.program_id(3)
    nk = pl.num_programs(3)

    @pl.when(ki == 0)
    def _():
        m_sc[...] = jnp.full(m_sc.shape, -1e30, jnp.float32)
        l_sc[...] = jnp.zeros(l_sc.shape, jnp.float32)
        acc_sc[...] = jnp.zeros(acc_sc.shape, jnp.float32)

    q_start = qi * tq
    k_start = ki * tk
    q_end = q_start + tq - 1

    @pl.when(k_start <= q_end)          # skip KV tiles entirely above diagonal
    def _():
        q = q_ref[0]
        k = k_ref[0]
        v = v_ref[0]
        if mxu_bf16 and q.dtype == jnp.float32:
            q, k, v = (q.astype(jnp.bfloat16), k.astype(jnp.bfloat16),
                       v.astype(jnp.bfloat16))

        s = jnp.einsum("hqd,hkd->hqk", q, k,
                       preferred_element_type=jnp.float32)    # (Hg, TQ, TK)
        row = q_start + lax.broadcasted_iota(jnp.int32, (tq, tk), 0)
        col = k_start + lax.broadcasted_iota(jnp.int32, (tq, tk), 1)
        s = jnp.where((col > row)[None, :, :], jnp.float32(-1e30), s)

        m_prev = m_sc[...]
        m_new = jnp.maximum(m_prev, jnp.max(s, axis=-1, keepdims=True))
        alpha = jnp.exp(m_prev - m_new)
        p = jnp.exp(s - m_new)
        l_sc[...] = alpha * l_sc[...] + jnp.sum(p, axis=-1, keepdims=True)
        acc_sc[...] = alpha * acc_sc[...] + jnp.einsum(
            "hqk,hkd->hqd", p.astype(v.dtype), v,
            preferred_element_type=jnp.float32)
        m_sc[...] = m_new

    @pl.when(ki == nk - 1)
    def _():
        o_ref[0] = (acc_sc[...] *
                    pl.reciprocal(l_sc[...], approx=True)).astype(o_ref.dtype)


# ----------------------------------------------------------------------------
# Pallas-call wrappers
# ----------------------------------------------------------------------------
def _linear(x, w, b, *, row_tile):
    """Tiled y = x @ W + b over (B, S, Din) -> (B, S, Dout); Dout tiled too."""
    B, S, Din = x.shape
    Dout = w.shape[1]
    tn = _pick_out_tile(Dout)
    isz = jnp.dtype(x.dtype).itemsize
    limit = _vmem_limit(
        [row_tile * Din * isz, Din * tn * 4, tn * 4, row_tile * tn * isz],
        extra_bytes=row_tile * tn * 4)
    return pl.pallas_call(
        _linear_kernel,
        out_shape=jax.ShapeDtypeStruct((B, S, Dout), x.dtype),
        grid_spec=pltpu.PrefetchScalarGridSpec(
            num_scalar_prefetch=0,
            grid=(B, Dout // tn, S // row_tile),      # weight tile resident
            in_specs=[
                pl.BlockSpec((1, row_tile, Din), lambda b, n, r: (b, r, 0)),
                pl.BlockSpec((Din, tn), lambda b, n, r: (0, n)),
                pl.BlockSpec((1, tn), lambda b, n, r: (0, n)),
            ],
            out_specs=pl.BlockSpec((1, row_tile, tn), lambda b, n, r: (b, r, n)),
        ),
        compiler_params=pltpu.CompilerParams(
            dimension_semantics=("parallel", "parallel", "parallel"),
            vmem_limit_bytes=limit),
    )(x, w, b.reshape(1, Dout))


def _attention_with_probs(qh, kh, vh, *, tq, mxu_bf16):
    """Per-head attention that also materializes the probabilities."""
    B, H, S, hd = qh.shape
    dtype = qh.dtype
    isz = jnp.dtype(dtype).itemsize
    limit = _vmem_limit(
        [tq * hd * isz, 2 * S * hd * isz, tq * hd * isz, tq * S * isz],
        extra_bytes=3 * tq * S * 4)
    kernel = functools.partial(_attn_probs_kernel, mxu_bf16=mxu_bf16)
    ctx, attn = pl.pallas_call(
        kernel,
        out_shape=(
            jax.ShapeDtypeStruct((B, H, S, hd), dtype),
            jax.ShapeDtypeStruct((B, H, S, S), dtype),
        ),
        grid_spec=pltpu.PrefetchScalarGridSpec(
            num_scalar_prefetch=0,
            grid=(B, H, S // tq),
            in_specs=[
                pl.BlockSpec((1, 1, tq, hd), lambda b, h, qi: (b, h, qi, 0)),
                pl.BlockSpec((1, 1, S, hd), lambda b, h, qi: (b, h, 0, 0)),
                pl.BlockSpec((1, 1, S, hd), lambda b, h, qi: (b, h, 0, 0)),
            ],
            out_specs=[
                pl.BlockSpec((1, 1, tq, hd), lambda b, h, qi: (b, h, qi, 0)),
                pl.BlockSpec((1, 1, tq, S), lambda b, h, qi: (b, h, qi, 0)),
            ],
        ),
        compiler_params=pltpu.CompilerParams(
            dimension_semantics=("parallel", "parallel", "parallel"),
            vmem_limit_bytes=limit),
    )(qh, kh, vh)
    return ctx, attn


def _attention_flash(qh, kh, vh, *, tq, tk, mxu_bf16):
    """Flash attention (no probability output)."""
    B, H, S, hd = qh.shape
    hg = _pick_head_group(H, hd)
    dtype = qh.dtype
    isz = jnp.dtype(dtype).itemsize
    limit = _vmem_limit(
        [hg * tq * hd * isz, 2 * hg * tk * hd * isz, hg * tq * hd * isz],
        extra_bytes=hg * tq * (hd + 2) * 4 + 3 * hg * tq * tk * 4)
    kernel = functools.partial(_attn_flash_kernel, mxu_bf16=mxu_bf16)
    return pl.pallas_call(
        kernel,
        out_shape=jax.ShapeDtypeStruct((B, H, S, hd), dtype),
        grid_spec=pltpu.PrefetchScalarGridSpec(
            num_scalar_prefetch=0,
            grid=(B, H // hg, S // tq, S // tk),       # kv innermost
            in_specs=[
                pl.BlockSpec((1, hg, tq, hd), lambda b, h, qi, ki: (b, h, qi, 0)),
                pl.BlockSpec((1, hg, tk, hd), lambda b, h, qi, ki: (b, h, ki, 0)),
                pl.BlockSpec((1, hg, tk, hd), lambda b, h, qi, ki: (b, h, ki, 0)),
            ],
            out_specs=pl.BlockSpec((1, hg, tq, hd),
                                   lambda b, h, qi, ki: (b, h, qi, 0)),
            scratch_shapes=[
                pltpu.VMEM((hg, tq, 1), jnp.float32),   # running max
                pltpu.VMEM((hg, tq, 1), jnp.float32),   # running denom
                pltpu.VMEM((hg, tq, hd), jnp.float32),  # running context
            ],
        ),
        compiler_params=pltpu.CompilerParams(
            dimension_semantics=("parallel", "parallel", "parallel", "arbitrary"),
            vmem_limit_bytes=limit),
    )(qh, kh, vh)


def multi_head_attention(x, w_qkv, b_qkv, w_out, b_out, *, num_heads,
                         return_attn_weights=True, mxu_bf16=False):
    """Causal multi-head attention forward.

    x: (B, S, D); w_qkv: (D, 3D); b_qkv: (3D,); w_out: (D, D); b_out: (D,).
    Weights are stored (in_features, out_features) (torch weights transposed)
    and w_qkv/b_qkv are expected pre-folded with fold_qk_scale (one-time op).
    Returns (output (B,S,D), attn (B,H,S,S) or None).
    """
    B, S, D = x.shape
    head_dim = D // num_heads
    assert head_dim * num_heads == D, "d_model must be divisible by num_heads"

    tile = _pick_seq_tile(S)
    s_pad = _round_up(S, tile)
    xp = x if s_pad == S else jnp.pad(x, ((0, 0), (0, s_pad - S), (0, 0)))

    # --- QKV projection (Pallas, Dout-tiled) ---
    qkv = _linear(xp, w_qkv, b_qkv, row_tile=tile)                # (B, Sp, 3D)
    q = qkv[..., 0 * D:1 * D]
    k = qkv[..., 1 * D:2 * D]
    v = qkv[..., 2 * D:3 * D]

    # --- split_heads: layout plumbing in XLA (head_dim stays on lanes) ---
    def split_heads(t):
        return t.reshape(B, s_pad, num_heads, head_dim).transpose(0, 2, 1, 3)

    qh, kh, vh = split_heads(q), split_heads(k), split_heads(v)   # (B,H,Sp,hd)

    if return_attn_weights:
        ctx, attn = _attention_with_probs(qh, kh, vh, tq=tile, mxu_bf16=mxu_bf16)
        attn = attn[:, :, :S, :S]
    else:
        ctx = _attention_flash(qh, kh, vh, tq=tile, tk=tile, mxu_bf16=mxu_bf16)
        attn = None

    # --- combine_heads (XLA plumbing) + output projection (Pallas) ---
    attn_out = ctx.transpose(0, 2, 1, 3).reshape(B, s_pad, D)
    output = _linear(attn_out, w_out, b_out, row_tile=tile)[:, :S, :]
    return output, attn


# ----------------------------------------------------------------------------
# Demo + reference check
# ----------------------------------------------------------------------------
if __name__ == "__main__":
    # Small, forward-consistent shapes: batch=2, seq=8, d_model=32, heads=4.
    B, S, D, H = 2, 8, 32, 4

    key = jax.random.PRNGKey(0)
    kx, k1, k2, k3, k4 = jax.random.split(key, 5)

    x = jax.random.normal(kx, (B, S, D), dtype=jnp.float32)

    # Deterministic parameter init (torch Linear-equivalent, stored (in, out)).
    lim = 1.0 / math.sqrt(D)
    w_qkv = jax.random.uniform(k1, (D, 3 * D), jnp.float32, -lim, lim)
    b_qkv = jax.random.uniform(k2, (3 * D,), jnp.float32, -lim, lim)
    w_out = jax.random.uniform(k3, (D, D), jnp.float32, -lim, lim)
    b_out = jax.random.uniform(k4, (D,), jnp.float32, -lim, lim)

    # One-time host-side fold of 1/sqrt(head_dim) into the Q projection.
    w_qkv_f, b_qkv_f = fold_qk_scale(w_qkv, b_qkv, H)

    out, attn_weights = multi_head_attention(
        x, w_qkv_f, b_qkv_f, w_out, b_out, num_heads=H,
        return_attn_weights=True)
    out_flash, _ = multi_head_attention(
        x, w_qkv_f, b_qkv_f, w_out, b_out, num_heads=H,
        return_attn_weights=False)
    jax.block_until_ready((out, attn_weights, out_flash))

    # Pure-JAX reference check (mirrors the PyTorch module, unfolded weights).
    qkv = x @ w_qkv + b_qkv
    q, k, v = jnp.split(qkv, 3, axis=-1)

    def split_heads_ref(t):
        return t.reshape(B, S, H, D // H).transpose(0, 2, 1, 3)

    qh, kh, vh = split_heads_ref(q), split_heads_ref(k), split_heads_ref(v)
    scores = jnp.einsum("bhqd,bhkd->bhqk", qh, kh) / math.sqrt(D // H)
    mask = jnp.triu(jnp.full((S, S), -jnp.inf), k=1)[None, None]
    probs = jax.nn.softmax(scores + mask, axis=-1)
    ref_ctx = jnp.einsum("bhqk,bhkd->bhqd", probs, vh)
    ref_ctx = ref_ctx.transpose(0, 2, 1, 3).reshape(B, S, D)
    ref_out = ref_ctx @ w_out + b_out

    # Tolerances relaxed slightly for the approx (EUP) softmax reciprocal.
    assert jnp.allclose(out, ref_out, atol=2e-3, rtol=2e-3)
    assert jnp.allclose(attn_weights, probs, atol=2e-3, rtol=2e-3)
    assert jnp.allclose(out_flash, ref_out, atol=2e-3, rtol=2e-3)

    print("KERNEL_OK")
</pallas_src>

<mosaic_0001>
module attributes {stable_mosaic.version = 11 : i64} {
  func.func @_linear_kernel(%arg0: i32, %arg1: i32, %arg2: i32, %arg3: memref<1x8x32xf32, #tpu.memory_space<vmem>>, %arg4: memref<32x96xf32, #tpu.memory_space<vmem>>, %arg5: memref<1x96xf32, #tpu.memory_space<vmem>>, %arg6: memref<1x8x96xf32, #tpu.memory_space<vmem>>) attributes {dimension_semantics = [#tpu.dimension_semantics<parallel>, #tpu.dimension_semantics<parallel>, #tpu.dimension_semantics<parallel>], iteration_bounds = array<i64: 2, 1, 1>, scalar_prefetch = 0 : i64, scratch_operands = 0 : i64, tpu.core_type = #tpu.core_type<tc>, window_params = [{transform_indices = @transform_0, window_bounds = array<i64: 1, 8, 32>}, {transform_indices = @transform_1, window_bounds = array<i64: 32, 96>}, {transform_indices = @transform_2, window_bounds = array<i64: 1, 96>}, {transform_indices = @transform_3, window_bounds = array<i64: 1, 8, 96>}]} {
    %c0 = arith.constant 0 : index
    %c0_0 = arith.constant 0 : index
    %c0_1 = arith.constant 0 : index
    %0 = vector.load %arg3[%c0, %c0_0, %c0_1] : memref<1x8x32xf32, #tpu.memory_space<vmem>>, vector<1x8x32xf32>
    %1 = vector.shape_cast %0 : vector<1x8x32xf32> to vector<8x32xf32>
    %c0_2 = arith.constant 0 : index
    %c0_3 = arith.constant 0 : index
    %2 = vector.load %arg4[%c0_2, %c0_3] : memref<32x96xf32, #tpu.memory_space<vmem>>, vector<32x96xf32>
    %cst = arith.constant dense<0.000000e+00> : vector<8x96xf32>
    %3 = tpu.matmul %1, %2, %cst {dimension_numbers = #tpu.dot_dimension_numbers<[1], [0], [0], [1], [0, 0, 1, 1], [], []>} : vector<8x32xf32>, vector<32x96xf32>, vector<8x96xf32> -> vector<8x96xf32>
    %c0_4 = arith.constant 0 : index
    %c0_5 = arith.constant 0 : index
    %4 = vector.load %arg5[%c0_4, %c0_5] : memref<1x96xf32, #tpu.memory_space<vmem>>, vector<1x96xf32>
    %5 = vector.broadcast %4 : vector<1x96xf32> to vector<8x96xf32>
    %6 = arith.addf %3, %5 : vector<8x96xf32>
    %c0_6 = arith.constant 0 : index
    %c0_7 = arith.constant 0 : index
    %c0_8 = arith.constant 0 : index
    %7 = vector.load %arg6[%c0_6, %c0_7, %c0_8] : memref<1x8x96xf32, #tpu.memory_space<vmem>>, vector<1x8x96xf32>
    %8 = vector.shape_cast %7 : vector<1x8x96xf32> to vector<8x96xf32>
    %9 = vector.shape_cast %6 : vector<8x96xf32> to vector<1x8x96xf32>
    tpu.vector_store %arg6[%c0_6, %c0_7, %c0_8], %9 {strides = array<i32>} : memref<1x8x96xf32, #tpu.memory_space<vmem>>, vector<1x8x96xf32>,
    return
  }
  func.func @transform_0(%arg0: i32, %arg1: i32, %arg2: i32) -> (i32, i32, i32) {
    %c0_i32 = arith.constant 0 : i32
    %c0_i32_0 = arith.constant 0 : i32
    return %arg0, %arg2, %c0_i32 : i32, i32, i32
  }
  func.func @transform_1(%arg0: i32, %arg1: i32, %arg2: i32) -> (i32, i32) {
    %c0_i32 = arith.constant 0 : i32
    %c0_i32_0 = arith.constant 0 : i32
    return %c0_i32, %arg1 : i32, i32
  }
  func.func @transform_2(%arg0: i32, %arg1: i32, %arg2: i32) -> (i32, i32) {
    %c0_i32 = arith.constant 0 : i32
    %c0_i32_0 = arith.constant 0 : i32
    return %c0_i32, %arg1 : i32, i32
  }
  func.func @transform_3(%arg0: i32, %arg1: i32, %arg2: i32) -> (i32, i32, i32) {
    %c0_i32 = arith.constant 0 : i32
    return %arg0, %arg2, %arg1 : i32, i32, i32
  }
}

</mosaic_0001>

<llo_original>
// kernel: tpu_custom_call.1
$region0: #{tpu_custom_call.1}
  #allocation0 [shape = 'u32[]', space=smem, size = 0x4, offset = 0x4, fixed_abs, tag = 'smem constant byte address 0x4 - core index']
  #allocation1 [shape = 'u32[144,128]{1,0:T(1,128)}', space=vmem, size = 0x12000, scoped, tag = 'internal scratch']
  %s0 = inlined_call_operand.hbm [shape: f32[2,8,32], index: 0, kind: input, shape index: {}]
  %s1 = inlined_call_operand.hbm [shape: f32[32,96], index: 1, kind: input, shape index: {}]
  %s2 = inlined_call_operand.vmem [shape: f32[1,96], index: 2, kind: input, shape index: {}]
  %s3 = inlined_call_operand.hbm [shape: f32[2,8,96], index: 3, kind: output, shape index: {}]
  %s4 = sld [smem:[#allocation0]]
  $region53: #{tpu_custom_call.1} parent=0
    _
  %s6 = ssub.s32 1, %s4
  %s7 = scalar_select 0, %s6, %s4
  $region1: #{tpu_custom_call.1} parent=0
    #allocation2 [shape = 'u8[8192]{0}', space=vmem, size = 0x2000, scoped, tag = 'input window, operand 0']
    #allocation3 [shape = 's32[2]{0}', space=sflag, size = 0x8, scoped, tag = 'scoped memory for tpu_custom_call.1']
    #allocation4 [shape = 's32[2]{0}', space=sflag, size = 0x8, scoped, tag = 'scoped memory for tpu_custom_call.1']
    #allocation5 [shape = 'u8[16384]{0}', space=vmem, size = 0x4000, scoped, tag = 'input window, operand 1, single buffered']
    #allocation6 [shape = 's32[1]{0}', space=sflag, size = 0x4, scoped, tag = 'scoped memory for tpu_custom_call.1']
    #allocation7 [shape = 'u8[8192]{0}', space=vmem, size = 0x2000, scoped, tag = 'output window, operand 0']
    %8 = vsyncpa [#allocation3], 0
    %s9 = scalar_lea.sflag [#allocation3], 1
    %10 = vsyncpa %s9, 0
    %11 = vsyncpa [#allocation6], 0
    %12 = vsyncpa [#allocation4], 0
    %s13 = scalar_lea.sflag [#allocation4], 1
    %14 = vsyncpa %s13, 0
    loop: start=0, step=1, limit=4
    $region2: #{tpu_custom_call.1} parent=1 // loop_pre_header
      _
    $region3: #{tpu_custom_call.1} parent=1 // loop_header
      %s16 = sphi 0, %s20
      %p17 = scmp.ge.s32.totalorder %s16, 4
      %s23 = sphi 0, %s42
      %s24 = sphi 0, %s38
      %s25 = sphi 0, %s34
      %s26 = sphi 0, %s23
      %s27 = sphi 0, %s24
      %s28 = sphi 0, %s25
      %s29 = sphi 0, %s26
      %s30 = sphi 0, %s27
      %s31 = sphi 0, %s28
      %s47 = sphi 0, %s49
      %s50 = sphi 0, %s47
      %s51 = sphi 0, %s50
      %s67 = sphi 0, %s51
      %s73 = sphi 0, %s75
      %s76 = sphi 0, %s73
      %s77 = sphi 0, %s76
      %s93 = sphi 0, %s77
      %s99 = sphi 0, %s101
      %s102 = sphi 0, %s99
      %s103 = sphi 0, %s102
      %s119 = sphi 0, %s103
      %s129 = sphi 0, %s131
      %s132 = sphi 0, %s129
      %s133 = sphi 0, %s132
      %s149 = sphi 0, %s133
    $region4: #{tpu_custom_call.1} parent=1 // loop_header_branch
      %19 = sbr.rel (%p17) target = $region8
    $region5: #{tpu_custom_call.1} parent=1 // loop_body
      %s21 = ssub.s32 %s16, 1
      %s22 = ssub.s32 %s16, 2
      %s32 = sadd.s32 1, %s25
      %p33 = scmp.ge.s32.totalorder %s32, 1
      %s34 = scalar_select %p33, 0, %s32
      %s35 = sadd.s32 1, %s24
      %s36 = scalar_select %p33, %s35, %s24
      %p37 = scmp.ge.s32.totalorder %s36, 1
      %s38 = scalar_select %p37, 0, %s36
      %s39 = sadd.s32 1, %s23
      %s40 = scalar_select %p37, %s39, %s23
      %p41 = scmp.ge.s32.totalorder %s40, 2
      %s42 = scalar_select %p41, 0, %s40
      %s43 = ssub.s32 %s23, %s42
      %s44 = ssub.s32 %s25, %s34
      %s45 = sor.u32 %s43, %s44
      %p46 = scmp.eq.s32.totalorder %s45, 0
      %s48 = sadd.s32 %s47, 1
      %s49 = scalar_select %p46, %s47, %s48
      %p52 = pneg %p46
      %p53 = scmp.eq.s32.totalorder %s16, 1
      %p54 = por %p52, %p53
      %p55 = scmp.ne.s32.totalorder %s47, %s50
      %p56 = scmp.eq.s32.totalorder %s16, 0
      %p57 = por %p55, %p56
      %p58 = scmp.ne.s32.totalorder %s47, %s50
      %p59 = scmp.eq.s32.totalorder %s21, 1
      %p60 = por %p58, %p59
      %p61 = scmp.ne.s32.totalorder %s50, %s51
      %p62 = scmp.eq.s32.totalorder %s21, 0
      %p63 = por %p61, %p62
      %p64 = scmp.ne.s32.totalorder %s50, %s51
      %p65 = scmp.eq.s32.totalorder %s22, 1
      %p66 = por %p64, %p65
      %p68 = scmp.ne.s32.totalorder %s51, %s67
      %p69 = scmp.eq.s32.totalorder %s22, 0
      %p70 = por %p68, %p69
      %s71 = ssub.s32 %s24, %s38
      %p72 = scmp.eq.s32.totalorder %s71, 0
      %s74 = sadd.s32 %s73, 1
      %s75 = scalar_select %p72, %s73, %s74
      %p78 = pneg %p72
      %p79 = scmp.eq.s32.totalorder %s16, 1
      %p80 = por %p78, %p79
      %p81 = scmp.ne.s32.totalorder %s73, %s76
      %p82 = scmp.eq.s32.totalorder %s16, 0
      %p83 = por %p81, %p82
      %p84 = scmp.ne.s32.totalorder %s73, %s76
      %p85 = scmp.eq.s32.totalorder %s21, 1
      %p86 = por %p84, %p85
      %p87 = scmp.ne.s32.totalorder %s76, %s77
      %p88 = scmp.eq.s32.totalorder %s21, 0
      %p89 = por %p87, %p88
      %p90 = scmp.ne.s32.totalorder %s76, %s77
      %p91 = scmp.eq.s32.totalorder %s22, 1
      %p92 = por %p90, %p91
      %p94 = scmp.ne.s32.totalorder %s77, %s93
      %p95 = scmp.eq.s32.totalorder %s22, 0
      %p96 = por %p94, %p95
      %s97 = ssub.s32 %s24, %s38
      %p98 = scmp.eq.s32.totalorder %s97, 0
      %s100 = sadd.s32 %s99, 1
      %s101 = scalar_select %p98, %s99, %s100
      %p104 = pneg %p98
      %p105 = scmp.eq.s32.totalorder %s16, 1
      %p106 = por %p104, %p105
      %p107 = scmp.ne.s32.totalorder %s99, %s102
      %p108 = scmp.eq.s32.totalorder %s16, 0
      %p109 = por %p107, %p108
      %p110 = scmp.ne.s32.totalorder %s99, %s102
      %p111 = scmp.eq.s32.totalorder %s21, 1
      %p112 = por %p110, %p111
      %p113 = scmp.ne.s32.totalorder %s102, %s103
      %p114 = scmp.eq.s32.totalorder %s21, 0
      %p115 = por %p113, %p114
      %p116 = scmp.ne.s32.totalorder %s102, %s103
      %p117 = scmp.eq.s32.totalorder %s22, 1
      %p118 = por %p116, %p117
      %p120 = scmp.ne.s32.totalorder %s103, %s119
      %p121 = scmp.eq.s32.totalorder %s22, 0
      %p122 = por %p120, %p121
      %s123 = ssub.s32 %s23, %s42
      %s124 = ssub.s32 %s25, %s34
      %s125 = sor.u32 %s123, %s124
      %s126 = ssub.s32 %s24, %s38
      %s127 = sor.u32 %s125, %s126
      %p128 = scmp.eq.s32.totalorder %s127, 0
      %s130 = sadd.s32 %s129, 1
      %s131 = scalar_select %p128, %s129, %s130
      %p134 = pneg %p128
      %p135 = scmp.eq.s32.totalorder %s16, 1
      %p136 = por %p134, %p135
      %p137 = scmp.ne.s32.totalorder %s129, %s132
      %p138 = scmp.eq.s32.totalorder %s16, 0
      %p139 = por %p137, %p138
      %p140 = scmp.ne.s32.totalorder %s129, %s132
      %p141 = scmp.eq.s32.totalorder %s21, 1
      %p142 = por %p140, %p141
      %p143 = scmp.ne.s32.totalorder %s132, %s133
      %p144 = scmp.eq.s32.totalorder %s21, 0
      %p145 = por %p143, %p144
      %p146 = scmp.ne.s32.totalorder %s132, %s133
      %p147 = scmp.eq.s32.totalorder %s22, 1
      %p148 = por %p146, %p147
      %p150 = scmp.ne.s32.totalorder %s133, %s149
      %p151 = scmp.eq.s32.totalorder %s22, 0
      %p152 = por %p150, %p151
      %p153 = scmp.le.s32.totalorder 1, %s16
      %p154 = scmp.lt.s32.totalorder %s16, 3
      %p155 = pnand %p153, %p154
      %p156 = pneg %p155
      // Predicated region
      $region9: #{tpu_custom_call.1} parent=5 // pred_check
        _
      $region10: #{tpu_custom_call.1} parent=5 // pred_check_branch
        %158 = sbr.rel (%p155) target = $region12
      $region11: #{tpu_custom_call.1} parent=5 // pred_region
        %s159 = ssub.s32 %s16, 1
        // Predicated region
        $region13: #{tpu_custom_call.1} parent=11 // pred_check
          %p160 = pneg %p89
        $region14: #{tpu_custom_call.1} parent=11 // pred_check_branch
          %162 = sbr.rel (%p160) target = $region16
        $region15: #{tpu_custom_call.1} parent=11 // pred_region
          %s164 = ssub.s32 512, 512
          %165 = vsyncadd [#allocation6], %s164
          %s166 = smul.addr %s27, 128
          %s167 = scalar_lea.hbm %s1, %s166
          %s168 = sshll.u32 [#allocation5], 4
          %s169 = int_to_ptr.vmem [resolvable:$true] %s168
          %174 = dma.hbm_to_vmem [thread:$0]  %s167, 512, %s169, [#allocation6], 128, 128, 8
        $region16: #{tpu_custom_call.1} parent=11 // pred_fallthru
          _
        // Predicated region
        $region17: #{tpu_custom_call.1} parent=11 // pred_check
          %p175 = pneg %p115
        $region18: #{tpu_custom_call.1} parent=11 // pred_check_branch
          %177 = sbr.rel (%p175) target = $region20
        $region19: #{tpu_custom_call.1} parent=11 // pred_region
          %p178 = scmp.lt.s32.totalorder %s27, 0
          %s179 = scalar_select %p178, %s27, 0
          %s180 = scalar_lea.vmem %s2, %s179
        $region20: #{tpu_custom_call.1} parent=11 // pred_fallthru
          _
      $region12: #{tpu_custom_call.1} parent=5 // pred_fallthru
        _
      %p181 = scmp.lt.s32.totalorder %s16, 2
      // Predicated region
      $region21: #{tpu_custom_call.1} parent=5 // pred_check
        %p182 = pneg %p181
      $region22: #{tpu_custom_call.1} parent=5 // pred_check_branch
        %184 = sbr.rel (%p182) target = $region24
      $region23: #{tpu_custom_call.1} parent=5 // pred_region
        // Predicated region
        $region25: #{tpu_custom_call.1} parent=23 // pred_check
          %p185 = pneg %p57
        $region26: #{tpu_custom_call.1} parent=23 // pred_check_branch
          %187 = sbr.rel (%p185) target = $region28
        $region27: #{tpu_custom_call.1} parent=23 // pred_region
          %s188 = sand.u32 %s47, 1
          %s189 = scalar_lea.sflag [#allocation3], %s188
          %s190 = sand.u32 %s47, 1
          %s191 = smul.addr %s190, 8
          %s192 = scalar_lea.vmem [#allocation2], %s191
          %s194 = ssub.s32 128, 128
          %195 = vsyncadd %s189, %s194
          %s196 = sadd.s32 %s25, %s23
          %s197 = smul.addr %s196, 128
          %s198 = scalar_lea.hbm %s0, %s197
          %s200 = sshll.u32 %s192, 4
          %s201 = int_to_ptr.vmem [resolvable:$true] %s200
          %203 = dma.hbm_to_vmem [thread:$0]  %s198, 128, %s201, %s189
        $region28: #{tpu_custom_call.1} parent=23 // pred_fallthru
          _
      $region24: #{tpu_custom_call.1} parent=5 // pred_fallthru
        _
      %p204 = scmp.le.s32.totalorder 1, %s16
      %p205 = scmp.lt.s32.totalorder %s16, 3
      %p206 = pnand %p204, %p205
      %p207 = pneg %p206
      // Predicated region
      $region29: #{tpu_custom_call.1} parent=5 // pred_check
        _
      $region30: #{tpu_custom_call.1} parent=5 // pred_check_branch
        %209 = sbr.rel (%p206) target = $region32
      $region31: #{tpu_custom_call.1} parent=5 // pred_region
        %s210 = ssub.s32 %s16, 1
        %s211 = sand.u32 %s50, 1
        %s212 = scalar_lea.sflag [#allocation3], %s211
        %s213 = sand.u32 %s50, 1
        %s214 = smul.addr %s213, 8
        %s215 = scalar_lea.vmem [#allocation2], %s214
        // Predicated region
        $region33: #{tpu_custom_call.1} parent=31 // pred_check
          %p216 = pneg %p63
        $region34: #{tpu_custom_call.1} parent=31 // pred_check_branch
          %218 = sbr.rel (%p216) target = $region36
        $region35: #{tpu_custom_call.1} parent=31 // pred_region
          %219 = dma.done %s212, 128
        $region36: #{tpu_custom_call.1} parent=31 // pred_fallthru
          _
        // Predicated region
        $region37: #{tpu_custom_call.1} parent=31 // pred_check
          %p220 = pneg %p89
        $region38: #{tpu_custom_call.1} parent=31 // pred_check_branch
          %222 = sbr.rel (%p220) target = $region40
        $region39: #{tpu_custom_call.1} parent=31 // pred_region
          %223 = dma.done [#allocation6], 512
        $region40: #{tpu_custom_call.1} parent=31 // pred_fallthru
          _
        %s224 = sand.u32 %s50, 1
        %s225 = scalar_lea.sflag [#allocation3], %s224
        %s226 = sand.u32 %s50, 1
        %s227 = smul.addr %s226, 8
        %s228 = scalar_lea.vmem [#allocation2], %s227
        %p229 = pneg %p63
        %p230 = pneg %p60
        %p231 = pneg %p89
        %p232 = pneg %p86
        %p233 = scmp.lt.s32.totalorder %s27, 0
        %s234 = scalar_select %p233, %s27, 0
        %s235 = scalar_lea.vmem %s2, %s234
        %p236 = pneg %p115
        %p237 = pneg %p112
        %p238 = pneg %p145
        %p239 = pneg %p142
        %s240 = sand.u32 %s132, 1
        %s241 = scalar_lea.sflag [#allocation4], %s240
        %s242 = sand.u32 %s132, 1
        %s243 = smul.addr %s242, 8
        %s244 = scalar_lea.vmem [#allocation7], %s243
        %p245 = scmp.lt.s32.totalorder %s27, 0
        %s246 = scalar_select %p245, %s27, 0
        %s247 = scalar_lea.vmem %s2, %s246
        %v248 = vld [vmem:[%s215] sm:$0xff]
        %v249 = vld [vmem:[#allocation5] sm:$0xff]
        %v250 = vld [vmem:[#allocation5 + $0x8] sm:$0xff]
        %v251 = vld [vmem:[#allocation5 + $0x10] sm:$0xff]
        %v252 = vld [vmem:[#allocation5 + $0x18] sm:$0xff]
        %v253 = vld [vmem:[%s247] sm:$0x1]
        %v255 = vlaneseq
        %v256 = vshrl.u32 %v255, 7
        %v257 = vsub.s32 0, %v256
        %v258 = vrot.slane %v253, %v257
        %vm260 = vcmask 261120
        %v262 = vsel %vm260, %v248, 0
        %264 = vmatprep.subr.mxu0 0.0
        %265 = vmatpush1.msra.mxu0 %v249
        %266 = vmatprep.subr.mxu0 0.0
        %267 = vmatpush1.msra.mxu0 %v250
        %268 = vmatprep.subr.mxu0 0.0
        %269 = vmatpush1.msra.mxu0 %v251
        %270 = vmatprep.subr.mxu0 0.0
        %271 = vmatpush1.msra.mxu0 %v252
        %272 = vmatprep.subr.mxu0 0.0
        %273 = vmatpush1.msra.mxu0 0.0
        %274 = vmatprep.subr.mxu0 0.0
        %275 = vmatpush1.msra.mxu0 0.0
        %276 = vmatprep.subr.mxu0 0.0
        %277 = vmatpush1.msra.mxu0 0.0
        %278 = vmatprep.subr.mxu0 0.0
        %279 = vmatpush1.msra.mxu0 0.0
        %280 = vmatprep.subr.mxu0 0.0
        %281 = vmatpush1.msra.mxu0 0.0
        %282 = vmatprep.subr.mxu0 0.0
        %283 = vmatpush1.msra.mxu0 0.0
        %284 = vmatprep.subr.mxu0 0.0
        %285 = vmatpush1.msra.mxu0 0.0
        %286 = vmatprep.subr.mxu0 0.0
        %287 = vmatpush1.msra.mxu0 0.0
        %288 = vmatprep.subr.mxu0 0.0
        %289 = vmatpush1.msra.mxu0 0.0
        %290 = vmatprep.subr.mxu0 0.0
        %291 = vmatpush1.msra.mxu0 0.0
        %292 = vmatprep.subr.mxu0 0.0
        %293 = vmatpush1.msra.mxu0 0.0
        %294 = vmatprep.subr.mxu0 0.0
        %295 = vmatpush1.msra.mxu0 0.0
        %296 = vmatprep.subr.mxu0 0.0
        %297 = vmatpush1.msra.mxu0 0.0
        %298 = vmatprep.subr.mxu0 0.0
        %299 = vmatpush1.msra.mxu0 0.0
        %300 = vmatprep.subr.mxu0 0.0
        %301 = vmatpush1.msra.mxu0 0.0
        %302 = vmatprep.subr.mxu0 0.0
        %303 = vmatpush1.msra.mxu0 0.0
        %304 = vmatprep.subr.mxu0 0.0
        %305 = vmatpush1.msra.mxu0 0.0
        %306 = vmatprep.subr.mxu0 0.0
        %307 = vmatpush1.msra.mxu0 0.0
        %308 = vmatprep.subr.mxu0 0.0
        %309 = vmatpush1.msra.mxu0 0.0
        %310 = vmatprep.subr.mxu0 0.0
        %311 = vmatpush1.msra.mxu0 0.0
        %312 = vmatprep.subr.mxu0 0.0
        %313 = vmatpush1.msra.mxu0 0.0
        %314 = vmatprep.subr.mxu0 0.0
        %315 = vmatpush1.msra.mxu0 0.0
        %316 = vmatprep.subr.mxu0 0.0
        %317 = vmatpush1.msra.mxu0 0.0
        %318 = vmatprep.subr.mxu0 0.0
        %319 = vmatpush1.msra.mxu0 0.0
        %320 = vmatprep.subr.mxu0 0.0
        %321 = vmatpush1.msra.mxu0 0.0
        %322 = vmatprep.subr.mxu0 0.0
        %323 = vmatpush1.msra.mxu0 0.0
        %324 = vmatprep.subr.mxu0 0.0
        %325 = vmatpush1.msra.mxu0 0.0
        %326 = vmatprep.subr.mxu0 0.0
        %327 = vmatpush1.msra.mxu0 0.0
        %328 = vmatprep.mubr.f32.mxu0 0.0
        %329 = vmatmul.mubr.f32.gmra.mrb[0].mxu0 %v262
        %v330 = vpop.f32.mrb[0].mxu0
        %v331 = vadd.f32 %v258, %v330
        %v332 = vpop.f32.mrb[0].mxu0
        %333 = vdwg.mxu0
        %vm334 = vcmask 785408
        %335 = vst.msk [vmem:[%s244] sm:$0xff] %vm334, %v331
        %s336 = sand.u32 %s132, 1
        %s337 = scalar_lea.sflag [#allocation4], %s336
        %s338 = sand.u32 %s132, 1
        %s339 = smul.addr %s338, 8
        %s340 = scalar_lea.vmem [#allocation7], %s339
        // Predicated region
        $region41: #{tpu_custom_call.1} parent=31 // pred_check
          %p341 = pneg %p142
        $region42: #{tpu_custom_call.1} parent=31 // pred_check_branch
          %343 = sbr.rel (%p341) target = $region44
        $region43: #{tpu_custom_call.1} parent=31 // pred_region
          %s345 = ssub.s32 128, 128
          %346 = vsyncadd %s337, %s345
          %s347 = sadd.s32 %s27, %s28
          %s348 = sadd.s32 %s347, %s26
          %s349 = smul.addr %s348, 128
          %s350 = scalar_lea.hbm %s3, %s349
          %s352 = sshll.u32 %s340, 4
          %s353 = int_to_ptr.vmem [resolvable:$true] %s352
          %355 = dma.vmem_to_hbm [thread:$0]  %s353, 128, %s350, %s337
        $region44: #{tpu_custom_call.1} parent=31 // pred_fallthru
          _
      $region32: #{tpu_custom_call.1} parent=5 // pred_fallthru
        _
      %p356 = scmp.le.s32.totalorder 2, %s16
      // Predicated region
      $region45: #{tpu_custom_call.1} parent=5 // pred_check
        %p357 = pneg %p356
      $region46: #{tpu_custom_call.1} parent=5 // pred_check_branch
        %359 = sbr.rel (%p357) target = $region48
      $region47: #{tpu_custom_call.1} parent=5 // pred_region
        %s360 = ssub.s32 %s16, 2
        // Predicated region
        $region49: #{tpu_custom_call.1} parent=47 // pred_check
          %p361 = pneg %p148
        $region50: #{tpu_custom_call.1} parent=47 // pred_check_branch
          %363 = sbr.rel (%p361) target = $region52
        $region51: #{tpu_custom_call.1} parent=47 // pred_region
          %s364 = sand.u32 %s133, 1
          %s365 = scalar_lea.sflag [#allocation4], %s364
          %s366 = sand.u32 %s133, 1
          %s367 = smul.addr %s366, 8
          %s368 = scalar_lea.vmem [#allocation7], %s367
          %369 = dma.done %s365, 128
        $region52: #{tpu_custom_call.1} parent=47 // pred_fallthru
          _
      $region48: #{tpu_custom_call.1} parent=5 // pred_fallthru
        _
    $region6: #{tpu_custom_call.1} parent=1 // loop_footer
      %s20 = sadd.s32 1, %s16
    $region7: #{tpu_custom_call.1} parent=1 // loop_footer_branch
      %15 = sbr.rel target = $region3
    $region8: #{tpu_custom_call.1} parent=1 // loop_exit
      _
    %370 = vsyncpa [#allocation3], 1
    %s371 = scalar_lea.sflag [#allocation3], 1
    %372 = vsyncpa %s371, 1
    %373 = vsyncpa [#allocation6], 1
    %374 = vsyncpa [#allocation4], 1
    %s375 = scalar_lea.sflag [#allocation4], 1
    %376 = vsyncpa %s375, 1

</llo_original>
